<compile_context>
chip_gen: v5e
topology: v5e:2x2
jax: 0.10.0
libtpu: 0.0.40
codegen_flags: <defaults>
</compile_context>

<pallas_src>
import functools

import jax
import jax.numpy as jnp
from jax.experimental import pallas as pl
from jax.experimental.pallas import tpu as pltpu

H1, H2, H3 = 128, 256, 128  # hidden sizes fixed by the module
LANE = 128                  # TPU lane width
SUBLANE = 8                 # TPU sublane granularity (f32)


def _round_up(n: int, m: int) -> int:
    return ((n + m - 1) // m) * m


@functools.lru_cache(maxsize=1)
def _vmem_budget_bytes() -> int:
    """VMEM budget for this kernel (leaves headroom for compiler scratch)."""
    try:
        cap = int(pltpu.get_tpu_info().vmem_capacity_bytes)
    except Exception:
        cap = 64 * 1024 * 1024  # conservative fallback (v7x per-core VMEM)
    # 32 MiB headroom, never below 16 MiB, never above 96 MiB.
    return max(16 * 1024 * 1024, min(cap - 32 * 1024 * 1024, 96 * 1024 * 1024))


def _pick_tile(batch: int, d: int, io_itemsize: int, w_itemsize: int,
               requested: int) -> int:
    """Largest batch tile (multiple of 8 rows) that fits the VMEM budget."""
    req = _round_up(max(int(requested), SUBLANE), SUBLANE)
    budget = _vmem_budget_bytes()
    # Batch-independent VMEM: double-buffered weights + biases (constant index
    # maps -> never re-DMA'd, but the pipeline still allocates two buffers).
    fixed = 2 * ((d * H1 + H1 * H2 + H2 * H3 + H3 * d) * w_itemsize
                 + (H1 + H2 + H3 + d) * 4)
    # Per-row VMEM: x & out double buffers (io dtype) + f32 intermediates
    # (h1, h2, h3 and the pre-cast f32 output; budgeted conservatively).
    per_row = 2 * 2 * d * io_itemsize + (H1 + H2 + H3 + d) * 4
    avail = budget - fixed
    if avail >= per_row * SUBLANE:
        cap = (avail // per_row) // SUBLANE * SUBLANE
    else:
        cap = SUBLANE
    return max(SUBLANE, min(req, cap, _round_up(batch, SUBLANE)))


def _mlp_kernel(x_ref, w1_ref, b1_ref, w2_ref, b2_ref, w3_ref, b3_ref,
                w4_ref, b4_ref, o_ref):
    """Fused 4-layer MLP: (matmul + bias + relu) x3, final matmul + bias."""
    wdt = w1_ref.dtype  # MXU input dtype (float32 or bfloat16)

    h = jnp.dot(x_ref[...].astype(wdt), w1_ref[...],
                preferred_element_type=jnp.float32) + b1_ref[...]
    h = jnp.maximum(h, 0.0)
    # dropout1: identity in eval mode

    h = jnp.dot(h.astype(wdt), w2_ref[...],
                preferred_element_type=jnp.float32) + b2_ref[...]
    h = jnp.maximum(h, 0.0)
    # dropout2: identity in eval mode

    h = jnp.dot(h.astype(wdt), w3_ref[...],
                preferred_element_type=jnp.float32) + b3_ref[...]
    h = jnp.maximum(h, 0.0)

    out = jnp.dot(h.astype(wdt), w4_ref[...],
                  preferred_element_type=jnp.float32) + b4_ref[...]
    o_ref[...] = out.astype(o_ref.dtype)


@functools.partial(jax.jit, static_argnames=("batch_tile",))
def diffusion_model_forward(x, params, batch_tile=4096):
    """x: (B, D) float32 or bfloat16.

    params: weights w{1..4} shaped (in, out) [float32 or bfloat16] and biases
    b{1..4} shaped (1, out) [float32].  Output dtype follows x.dtype.
    """
    B, D = x.shape
    out_dtype = x.dtype

    w1, b1 = params["w1"], params["b1"]
    w2, b2 = params["w2"], params["b2"]
    w3, b3 = params["w3"], params["b3"]
    w4, b4 = params["w4"], params["b4"]

    tile = _pick_tile(B, D, int(jnp.dtype(x.dtype).itemsize),
                      int(jnp.dtype(w1.dtype).itemsize), batch_tile)
    grid = (pl.cdiv(B, tile),)

    # Advisory cost hint for XLA's scheduler around the custom call.
    w_elems = D * H1 + H1 * H2 + H2 * H3 + H3 * D
    cost = pl.CostEstimate(
        flops=2 * B * w_elems,
        transcendentals=0,
        bytes_accessed=(2 * B * D * int(jnp.dtype(x.dtype).itemsize)
                        + w_elems * int(jnp.dtype(w1.dtype).itemsize)
                        + (H1 + H2 + H3 + D) * 4),
    )

    # Weights/biases: full-array blocks with constant index maps -> they stay
    # VMEM-resident for the whole batch grid (never re-DMA'd).
    full2d = lambda arr: pl.BlockSpec(arr.shape, lambda i: (0, 0))

    out = pl.pallas_call(
        _mlp_kernel,
        out_shape=jax.ShapeDtypeStruct((B, D), out_dtype),
        grid_spec=pl.GridSpec(
            grid=grid,
            in_specs=[
                pl.BlockSpec((tile, D), lambda i: (i, 0)),  # x (edge block ok)
                full2d(w1), full2d(b1),
                full2d(w2), full2d(b2),
                full2d(w3), full2d(b3),
                full2d(w4), full2d(b4),
            ],
            out_specs=pl.BlockSpec((tile, D), lambda i: (i, 0)),
        ),
        compiler_params=pltpu.CompilerParams(
            # Batch steps are independent -> shardable across v7x's 2 TCs.
            dimension_semantics=("parallel",),
            vmem_limit_bytes=_vmem_budget_bytes(),
        ),
        cost_estimate=cost,
    )(x, w1, b1, w2, b2, w3, b3, w4, b4)

    return out


def init_params(key, input_size):
    """Deterministic init mirroring nn.Linear shapes (stored as (in, out))."""
    dims = [(input_size, H1), (H1, H2), (H2, H3), (H3, input_size)]
    params = {}
    for idx, (fan_in, fan_out) in enumerate(dims, start=1):
        key, kw, kb = jax.random.split(key, 3)
        bound = 1.0 / jnp.sqrt(fan_in)
        params[f"w{idx}"] = jax.random.uniform(
            kw, (fan_in, fan_out), jnp.float32, -bound, bound)
        params[f"b{idx}"] = jax.random.uniform(
            kb, (1, fan_out), jnp.float32, -bound, bound)
    return params


if __name__ == "__main__":
    input_size = 32

    key = jax.random.PRNGKey(0)
    key, kx, kx2 = jax.random.split(key, 3)
    params = init_params(key, input_size)

    # Pure-JAX reference (eval-mode semantics).
    def ref(x, p):
        h = jnp.maximum(x @ p["w1"].astype(jnp.float32) + p["b1"], 0.0)
        h = jnp.maximum(h @ p["w2"].astype(jnp.float32) + p["b2"], 0.0)
        h = jnp.maximum(h @ p["w3"].astype(jnp.float32) + p["b3"], 0.0)
        return h @ p["w4"].astype(jnp.float32) + p["b4"]

    # --- small batch, full precision (tight check) ---
    x = jax.random.normal(kx, (8, input_size), jnp.float32)
    expected = ref(x, params)
    out = diffusion_model_forward(x, params)
    jax.block_until_ready(out)
    assert out.shape == (8, input_size)
    assert jnp.allclose(out, expected, atol=1e-5, rtol=1e-5)

    # --- ragged batch (B not a multiple of the tile -> edge-block path) ---
    x2 = jax.random.normal(kx2, (100, input_size), jnp.float32)
    expected2 = ref(x2, params)
    out2 = diffusion_model_forward(x2, params, batch_tile=64)
    jax.block_until_ready(out2)
    assert out2.shape == (100, input_size)
    assert jnp.allclose(out2, expected2, atol=1e-5, rtol=1e-5)

    # --- bf16 weights AND bf16 activation I/O, f32 accumulation/epilogue ---
    params_bf16 = {k: (v.astype(jnp.bfloat16) if k.startswith("w") else v)
                   for k, v in params.items()}
    out_bf16 = diffusion_model_forward(x.astype(jnp.bfloat16), params_bf16)
    jax.block_until_ready(out_bf16)
    assert out_bf16.shape == (8, input_size)
    assert out_bf16.dtype == jnp.bfloat16
    assert jnp.allclose(out_bf16.astype(jnp.float32), expected,
                        atol=2e-1, rtol=2e-1)

    print("KERNEL_OK")
</pallas_src>

<mosaic_0001>
module attributes {stable_mosaic.version = 11 : i64} {
  func.func @_mlp_kernel(%arg0: i32, %arg1: memref<8x32xf32, #tpu.memory_space<vmem>>, %arg2: memref<32x128xf32, #tpu.memory_space<vmem>>, %arg3: memref<1x128xf32, #tpu.memory_space<vmem>>, %arg4: memref<128x256xf32, #tpu.memory_space<vmem>>, %arg5: memref<1x256xf32, #tpu.memory_space<vmem>>, %arg6: memref<256x128xf32, #tpu.memory_space<vmem>>, %arg7: memref<1x128xf32, #tpu.memory_space<vmem>>, %arg8: memref<128x32xf32, #tpu.memory_space<vmem>>, %arg9: memref<1x32xf32, #tpu.memory_space<vmem>>, %arg10: memref<8x32xf32, #tpu.memory_space<vmem>>) attributes {dimension_semantics = [#tpu.dimension_semantics<parallel>], iteration_bounds = array<i64: 1>, scalar_prefetch = 0 : i64, scratch_operands = 0 : i64, tpu.core_type = #tpu.core_type<tc>, window_params = [{transform_indices = @transform_0, window_bounds = array<i64: 8, 32>}, {pipeline_mode = #tpu.pipeline_mode<synchronous>, transform_indices = @transform_1, window_bounds = array<i64: 32, 128>}, {pipeline_mode = #tpu.pipeline_mode<synchronous>, transform_indices = @transform_2, window_bounds = array<i64: 1, 128>}, {pipeline_mode = #tpu.pipeline_mode<synchronous>, transform_indices = @transform_3, window_bounds = array<i64: 128, 256>}, {pipeline_mode = #tpu.pipeline_mode<synchronous>, transform_indices = @transform_4, window_bounds = array<i64: 1, 256>}, {pipeline_mode = #tpu.pipeline_mode<synchronous>, transform_indices = @transform_5, window_bounds = array<i64: 256, 128>}, {pipeline_mode = #tpu.pipeline_mode<synchronous>, transform_indices = @transform_6, window_bounds = array<i64: 1, 128>}, {pipeline_mode = #tpu.pipeline_mode<synchronous>, transform_indices = @transform_7, window_bounds = array<i64: 128, 32>}, {pipeline_mode = #tpu.pipeline_mode<synchronous>, transform_indices = @transform_8, window_bounds = array<i64: 1, 32>}, {transform_indices = @transform_9, window_bounds = array<i64: 8, 32>}]} {
    %c0 = arith.constant 0 : index
    %c0_0 = arith.constant 0 : index
    %0 = vector.load %arg1[%c0, %c0_0] : memref<8x32xf32, #tpu.memory_space<vmem>>, vector<8x32xf32>
    %c0_1 = arith.constant 0 : index
    %c0_2 = arith.constant 0 : index
    %1 = vector.load %arg2[%c0_1, %c0_2] : memref<32x128xf32, #tpu.memory_space<vmem>>, vector<32x128xf32>
    %cst = arith.constant dense<0.000000e+00> : vector<8x128xf32>
    %2 = tpu.matmul %0, %1, %cst {dimension_numbers = #tpu.dot_dimension_numbers<[1], [0], [0], [1], [0, 0, 1, 1], [], []>} : vector<8x32xf32>, vector<32x128xf32>, vector<8x128xf32> -> vector<8x128xf32>
    %c0_3 = arith.constant 0 : index
    %c0_4 = arith.constant 0 : index
    %3 = vector.load %arg3[%c0_3, %c0_4] : memref<1x128xf32, #tpu.memory_space<vmem>>, vector<1x128xf32>
    %4 = vector.broadcast %3 : vector<1x128xf32> to vector<8x128xf32>
    %5 = arith.addf %2, %4 : vector<8x128xf32>
    %cst_5 = arith.constant 0.000000e+00 : f32
    %6 = vector.broadcast %cst_5 : f32 to vector<8x128xf32>
    %7 = arith.maximumf %5, %6 : vector<8x128xf32>
    %c0_6 = arith.constant 0 : index
    %c0_7 = arith.constant 0 : index
    %8 = vector.load %arg4[%c0_6, %c0_7] : memref<128x256xf32, #tpu.memory_space<vmem>>, vector<128x256xf32>
    %cst_8 = arith.constant dense<0.000000e+00> : vector<8x256xf32>
    %9 = tpu.matmul %7, %8, %cst_8 {dimension_numbers = #tpu.dot_dimension_numbers<[1], [0], [0], [1], [0, 0, 1, 1], [], []>} : vector<8x128xf32>, vector<128x256xf32>, vector<8x256xf32> -> vector<8x256xf32>
    %c0_9 = arith.constant 0 : index
    %c0_10 = arith.constant 0 : index
    %10 = vector.load %arg5[%c0_9, %c0_10] : memref<1x256xf32, #tpu.memory_space<vmem>>, vector<1x256xf32>
    %11 = vector.broadcast %10 : vector<1x256xf32> to vector<8x256xf32>
    %12 = arith.addf %9, %11 : vector<8x256xf32>
    %cst_11 = arith.constant 0.000000e+00 : f32
    %13 = vector.broadcast %cst_11 : f32 to vector<8x256xf32>
    %14 = arith.maximumf %12, %13 : vector<8x256xf32>
    %c0_12 = arith.constant 0 : index
    %c0_13 = arith.constant 0 : index
    %15 = vector.load %arg6[%c0_12, %c0_13] : memref<256x128xf32, #tpu.memory_space<vmem>>, vector<256x128xf32>
    %cst_14 = arith.constant dense<0.000000e+00> : vector<8x128xf32>
    %16 = tpu.matmul %14, %15, %cst_14 {dimension_numbers = #tpu.dot_dimension_numbers<[1], [0], [0], [1], [0, 0, 1, 1], [], []>} : vector<8x256xf32>, vector<256x128xf32>, vector<8x128xf32> -> vector<8x128xf32>
    %c0_15 = arith.constant 0 : index
    %c0_16 = arith.constant 0 : index
    %17 = vector.load %arg7[%c0_15, %c0_16] : memref<1x128xf32, #tpu.memory_space<vmem>>, vector<1x128xf32>
    %18 = vector.broadcast %17 : vector<1x128xf32> to vector<8x128xf32>
    %19 = arith.addf %16, %18 : vector<8x128xf32>
    %cst_17 = arith.constant 0.000000e+00 : f32
    %20 = vector.broadcast %cst_17 : f32 to vector<8x128xf32>
    %21 = arith.maximumf %19, %20 : vector<8x128xf32>
    %c0_18 = arith.constant 0 : index
    %c0_19 = arith.constant 0 : index
    %22 = vector.load %arg8[%c0_18, %c0_19] : memref<128x32xf32, #tpu.memory_space<vmem>>, vector<128x32xf32>
    %cst_20 = arith.constant dense<0.000000e+00> : vector<8x32xf32>
    %23 = tpu.matmul %21, %22, %cst_20 {dimension_numbers = #tpu.dot_dimension_numbers<[1], [0], [0], [1], [0, 0, 1, 1], [], []>} : vector<8x128xf32>, vector<128x32xf32>, vector<8x32xf32> -> vector<8x32xf32>
    %c0_21 = arith.constant 0 : index
    %c0_22 = arith.constant 0 : index
    %24 = vector.load %arg9[%c0_21, %c0_22] : memref<1x32xf32, #tpu.memory_space<vmem>>, vector<1x32xf32>
    %25 = vector.broadcast %24 : vector<1x32xf32> to vector<8x32xf32>
    %26 = arith.addf %23, %25 : vector<8x32xf32>
    %c0_23 = arith.constant 0 : index
    %c0_24 = arith.constant 0 : index
    %27 = vector.load %arg10[%c0_23, %c0_24] : memref<8x32xf32, #tpu.memory_space<vmem>>, vector<8x32xf32>
    tpu.vector_store %arg10[%c0_23, %c0_24], %26 {strides = array<i32>} : memref<8x32xf32, #tpu.memory_space<vmem>>, vector<8x32xf32>,
    return
  }
  func.func @transform_0(%arg0: i32) -> (i32, i32) {
    %c0_i32 = arith.constant 0 : i32
    %c0_i32_0 = arith.constant 0 : i32
    return %arg0, %c0_i32 : i32, i32
  }
  func.func @transform_1(%arg0: i32) -> (i32, i32) {
    %c0_i32 = arith.constant 0 : i32
    %c0_i32_0 = arith.constant 0 : i32
    %c0_i32_1 = arith.constant 0 : i32
    return %c0_i32, %c0_i32_0 : i32, i32
  }
  func.func @transform_2(%arg0: i32) -> (i32, i32) {
    %c0_i32 = arith.constant 0 : i32
    %c0_i32_0 = arith.constant 0 : i32
    %c0_i32_1 = arith.constant 0 : i32
    return %c0_i32, %c0_i32_0 : i32, i32
  }
  func.func @transform_3(%arg0: i32) -> (i32, i32) {
    %c0_i32 = arith.constant 0 : i32
    %c0_i32_0 = arith.constant 0 : i32
    %c0_i32_1 = arith.constant 0 : i32
    return %c0_i32, %c0_i32_0 : i32, i32
  }
  func.func @transform_4(%arg0: i32) -> (i32, i32) {
    %c0_i32 = arith.constant 0 : i32
    %c0_i32_0 = arith.constant 0 : i32
    %c0_i32_1 = arith.constant 0 : i32
    return %c0_i32, %c0_i32_0 : i32, i32
  }
  func.func @transform_5(%arg0: i32) -> (i32, i32) {
    %c0_i32 = arith.constant 0 : i32
    %c0_i32_0 = arith.constant 0 : i32
    %c0_i32_1 = arith.constant 0 : i32
    return %c0_i32, %c0_i32_0 : i32, i32
  }
  func.func @transform_6(%arg0: i32) -> (i32, i32) {
    %c0_i32 = arith.constant 0 : i32
    %c0_i32_0 = arith.constant 0 : i32
    %c0_i32_1 = arith.constant 0 : i32
    return %c0_i32, %c0_i32_0 : i32, i32
  }
  func.func @transform_7(%arg0: i32) -> (i32, i32) {
    %c0_i32 = arith.constant 0 : i32
    %c0_i32_0 = arith.constant 0 : i32
    %c0_i32_1 = arith.constant 0 : i32
    return %c0_i32, %c0_i32_0 : i32, i32
  }
  func.func @transform_8(%arg0: i32) -> (i32, i32) {
    %c0_i32 = arith.constant 0 : i32
    %c0_i32_0 = arith.constant 0 : i32
    %c0_i32_1 = arith.constant 0 : i32
    return %c0_i32, %c0_i32_0 : i32, i32
  }
  func.func @transform_9(%arg0: i32) -> (i32, i32) {
    %c0_i32 = arith.constant 0 : i32
    %c0_i32_0 = arith.constant 0 : i32
    return %arg0, %c0_i32 : i32, i32
  }
}

</mosaic_0001>

<llo_original>
// kernel: diffusion_model_forward.1
$region0: #{diffusion_model_forward.1}
  #allocation0 [shape = 'u32[]', space=smem, size = 0x4, offset = 0x4, fixed_abs, tag = 'smem constant byte address 0x4 - core index']
  #allocation1 [shape = 'u32[72,128]{1,0:T(1,128)}', space=vmem, size = 0x9000, scoped, tag = 'internal scratch']
  %s0 = inlined_call_operand.vmem [shape: f32[8,32], index: 0, kind: input, shape index: {}]
  %s1 = inlined_call_operand.vmem [shape: f32[32,128], index: 1, kind: input, shape index: {}]
  %s2 = inlined_call_operand.vmem [shape: f32[1,128], index: 2, kind: input, shape index: {}]
  %s3 = inlined_call_operand.hbm [shape: f32[128,256], index: 3, kind: input, shape index: {}]
  %s4 = inlined_call_operand.vmem [shape: f32[1,256], index: 4, kind: input, shape index: {}]
  %s5 = inlined_call_operand.hbm [shape: f32[256,128], index: 5, kind: input, shape index: {}]
  %s6 = inlined_call_operand.vmem [shape: f32[1,128], index: 6, kind: input, shape index: {}]
  %s7 = inlined_call_operand.vmem [shape: f32[128,32], index: 7, kind: input, shape index: {}]
  %s8 = inlined_call_operand.vmem [shape: f32[1,32], index: 8, kind: input, shape index: {}]
  %s9 = inlined_call_operand.hbm [shape: f32[8,32], index: 9, kind: output, shape index: {}]
  %s10 = sld [smem:[#allocation0]]
  $region54: #{diffusion_model_forward.1} parent=0
    _
  %s12 = ssub.s32 1, %s10
  %s13 = scalar_select 0, %s12, %s10
  $region1: #{diffusion_model_forward.1} parent=0
    #allocation2 [shape = 'u8[131072]{0}', space=vmem, size = 0x20000, scoped, tag = 'input window, operand 3, single buffered']
    #allocation3 [shape = 's32[1]{0}', space=sflag, size = 0x4, scoped, tag = 'scoped memory for diffusion_model_forward.1']
    #allocation4 [shape = 's32[1]{0}', space=sflag, size = 0x4, scoped, tag = 'scoped memory for diffusion_model_forward.1']
    #allocation5 [shape = 'u8[131072]{0}', space=vmem, size = 0x20000, scoped, tag = 'input window, operand 5, single buffered']
    #allocation6 [shape = 's32[1]{0}', space=sflag, size = 0x4, scoped, tag = 'scoped memory for diffusion_model_forward.1']
    #allocation7 [shape = 'u8[4096]{0}', space=vmem, size = 0x1000, scoped, tag = 'output window, operand 0, single buffered']
    %14 = vsyncpa [#allocation3], 0
    %15 = vsyncpa [#allocation6], 0
    %16 = vsyncpa [#allocation4], 0
    // Predicated region
    $region2: #{diffusion_model_forward.1} parent=1 // pred_check
      _
    $region3: #{diffusion_model_forward.1} parent=1 // pred_check_branch
      %18 = sbr.rel (0) target = $region5
    $region4: #{diffusion_model_forward.1} parent=1 // pred_region
      _
    $region5: #{diffusion_model_forward.1} parent=1 // pred_fallthru
      _
    // Predicated region
    $region6: #{diffusion_model_forward.1} parent=1 // pred_check
      _
    $region7: #{diffusion_model_forward.1} parent=1 // pred_check_branch
      %20 = sbr.rel (0) target = $region9
    $region8: #{diffusion_model_forward.1} parent=1 // pred_region
      _
    $region9: #{diffusion_model_forward.1} parent=1 // pred_fallthru
      _
    // Predicated region
    $region10: #{diffusion_model_forward.1} parent=1 // pred_check
      _
    $region11: #{diffusion_model_forward.1} parent=1 // pred_check_branch
      %22 = sbr.rel (0) target = $region13
    $region12: #{diffusion_model_forward.1} parent=1 // pred_region
      _
    $region13: #{diffusion_model_forward.1} parent=1 // pred_fallthru
      _
    // Predicated region
    $region14: #{diffusion_model_forward.1} parent=1 // pred_check
      _
    $region15: #{diffusion_model_forward.1} parent=1 // pred_check_branch
      %24 = sbr.rel (0) target = $region17
    $region16: #{diffusion_model_forward.1} parent=1 // pred_region
      %26 = vsyncadd [#allocation3], 0
      %s27 = sshll.u32 %s3, 4
      %s28 = int_to_ptr.hbm [resolvable:$true] %s27
      %s29 = sshll.u32 [#allocation2], 4
      %s30 = int_to_ptr.vmem [resolvable:$true] %s29
      %35 = dma.hbm_to_vmem [thread:$0]  %s28, 4096, %s30, [#allocation3], 256, 256, 16
    $region17: #{diffusion_model_forward.1} parent=1 // pred_fallthru
      _
    // Predicated region
    $region18: #{diffusion_model_forward.1} parent=1 // pred_check
      _
    $region19: #{diffusion_model_forward.1} parent=1 // pred_check_branch
      %37 = sbr.rel (0) target = $region21
    $region20: #{diffusion_model_forward.1} parent=1 // pred_region
      _
    $region21: #{diffusion_model_forward.1} parent=1 // pred_fallthru
      _
    // Predicated region
    $region22: #{diffusion_model_forward.1} parent=1 // pred_check
      _
    $region23: #{diffusion_model_forward.1} parent=1 // pred_check_branch
      %39 = sbr.rel (0) target = $region25
    $region24: #{diffusion_model_forward.1} parent=1 // pred_region
      %41 = vsyncadd [#allocation6], 0
      %s42 = sshll.u32 %s5, 4
      %s43 = int_to_ptr.hbm [resolvable:$true] %s42
      %s44 = sshll.u32 [#allocation5], 4
      %s45 = int_to_ptr.vmem [resolvable:$true] %s44
      %50 = dma.hbm_to_vmem [thread:$0]  %s43, 4096, %s45, [#allocation6], 128, 128, 8
    $region25: #{diffusion_model_forward.1} parent=1 // pred_fallthru
      _
    // Predicated region
    $region26: #{diffusion_model_forward.1} parent=1 // pred_check
      _
    $region27: #{diffusion_model_forward.1} parent=1 // pred_check_branch
      %52 = sbr.rel (0) target = $region29
    $region28: #{diffusion_model_forward.1} parent=1 // pred_region
      _
    $region29: #{diffusion_model_forward.1} parent=1 // pred_fallthru
      _
    // Predicated region
    $region30: #{diffusion_model_forward.1} parent=1 // pred_check
      _
    $region31: #{diffusion_model_forward.1} parent=1 // pred_check_branch
      %54 = sbr.rel (0) target = $region33
    $region32: #{diffusion_model_forward.1} parent=1 // pred_region
      _
    $region33: #{diffusion_model_forward.1} parent=1 // pred_fallthru
      _
    // Predicated region
    $region34: #{diffusion_model_forward.1} parent=1 // pred_check
      _
    $region35: #{diffusion_model_forward.1} parent=1 // pred_check_branch
      %56 = sbr.rel (0) target = $region37
    $region36: #{diffusion_model_forward.1} parent=1 // pred_region
      _
    $region37: #{diffusion_model_forward.1} parent=1 // pred_fallthru
      _
    // Predicated region
    $region38: #{diffusion_model_forward.1} parent=1 // pred_check
      _
    $region39: #{diffusion_model_forward.1} parent=1 // pred_check_branch
      %58 = sbr.rel (0) target = $region41
    $region40: #{diffusion_model_forward.1} parent=1 // pred_region
      %60 = dma.done [#allocation3], 4096
    $region41: #{diffusion_model_forward.1} parent=1 // pred_fallthru
      _
    // Predicated region
    $region42: #{diffusion_model_forward.1} parent=1 // pred_check
      _
    $region43: #{diffusion_model_forward.1} parent=1 // pred_check_branch
      %62 = sbr.rel (0) target = $region45
    $region44: #{diffusion_model_forward.1} parent=1 // pred_region
      %64 = dma.done [#allocation6], 4096
    $region45: #{diffusion_model_forward.1} parent=1 // pred_fallthru
      _
    %v65 = vld [vmem:[%s0] sm:$0xff]
    %v66 = vld [vmem:[%s1] sm:$0xff]
    %v67 = vld [vmem:[%s1 + $0x8] sm:$0xff]
    %v68 = vld [vmem:[%s1 + $0x10] sm:$0xff]
    %v69 = vld [vmem:[%s1 + $0x18] sm:$0xff]
    %v70 = vld [vmem:[%s2] sm:$0x1]
    %v72 = vperm.slane %v70, 0
    %vm74 = vcmask 261120
    %v76 = vsel %vm74, %v65, 0
    %78 = vmatpush.msra.mxu0 0.0
    %79 = vmatpush.msra.mxu0 0.0
    %80 = vmatpush.msra.mxu0 0.0
    %81 = vmatpush.msra.mxu0 0.0
    %82 = vmatpush.msra.mxu0 0.0
    %83 = vmatpush.msra.mxu0 0.0
    %84 = vmatpush.msra.mxu0 0.0
    %85 = vmatpush.msra.mxu0 0.0
    %86 = vmatpush.msra.mxu0 0.0
    %87 = vmatpush.msra.mxu0 0.0
    %88 = vmatpush.msra.mxu0 0.0
    %89 = vmatpush.msra.mxu0 0.0
    %90 = vmatpush.msra.mxu0 %v69
    %91 = vmatpush.msra.mxu0 %v68
    %92 = vmatpush.msra.mxu0 %v67
    %93 = vmatpush.msra.mxu0 %v66
    %94 = vmatmul.f32.gmra.mxu0 %v76
    %v95 = vpop.f32.mrf.mxu0
    %v96 = vadd.f32 %v72, %v95
    %97 = vdwg.mxu0
    %v98 = vmax.f32 %v96, 0.0
    %v99 = vld [vmem:[#allocation2] sm:$0xff]
    %v100 = vld [vmem:[#allocation2 + $0x8] sm:$0xff]
    %v101 = vld [vmem:[#allocation2 + $0x10] sm:$0xff]
    %v102 = vld [vmem:[#allocation2 + $0x18] sm:$0xff]
    %v103 = vld [vmem:[#allocation2 + $0x20] sm:$0xff]
    %v104 = vld [vmem:[#allocation2 + $0x28] sm:$0xff]
    %v105 = vld [vmem:[#allocation2 + $0x30] sm:$0xff]
    %v106 = vld [vmem:[#allocation2 + $0x38] sm:$0xff]
    %v107 = vld [vmem:[#allocation2 + $0x40] sm:$0xff]
    %v108 = vld [vmem:[#allocation2 + $0x48] sm:$0xff]
    %v109 = vld [vmem:[#allocation2 + $0x50] sm:$0xff]
    %v110 = vld [vmem:[#allocation2 + $0x58] sm:$0xff]
    %v111 = vld [vmem:[#allocation2 + $0x60] sm:$0xff]
    %v112 = vld [vmem:[#allocation2 + $0x68] sm:$0xff]
    %v113 = vld [vmem:[#allocation2 + $0x70] sm:$0xff]
    %v114 = vld [vmem:[#allocation2 + $0x78] sm:$0xff]
    %v115 = vld [vmem:[#allocation2 + $0x80] sm:$0xff]
    %v116 = vld [vmem:[#allocation2 + $0x88] sm:$0xff]
    %v117 = vld [vmem:[#allocation2 + $0x90] sm:$0xff]
    %v118 = vld [vmem:[#allocation2 + $0x98] sm:$0xff]
    %v119 = vld [vmem:[#allocation2 + $0xa0] sm:$0xff]
    %v120 = vld [vmem:[#allocation2 + $0xa8] sm:$0xff]
    %v121 = vld [vmem:[#allocation2 + $0xb0] sm:$0xff]
    %v122 = vld [vmem:[#allocation2 + $0xb8] sm:$0xff]
    %v123 = vld [vmem:[#allocation2 + $0xc0] sm:$0xff]
    %v124 = vld [vmem:[#allocation2 + $0xc8] sm:$0xff]
    %v125 = vld [vmem:[#allocation2 + $0xd0] sm:$0xff]
    %v126 = vld [vmem:[#allocation2 + $0xd8] sm:$0xff]
    %v127 = vld [vmem:[#allocation2 + $0xe0] sm:$0xff]
    %v128 = vld [vmem:[#allocation2 + $0xe8] sm:$0xff]
    %v129 = vld [vmem:[#allocation2 + $0xf0] sm:$0xff]
    %v130 = vld [vmem:[#allocation2 + $0xf8] sm:$0xff]
    %v131 = vld [vmem:[%s4] sm:$0x3]
    %v133 = vperm.slane %v131, 0
    %v134 = vperm.slane %v131, 1
    %137 = vmatpush.msra.mxu0 %v129
    %138 = vmatpush.msra.mxu0 %v127
    %139 = vmatpush.msra.mxu0 %v125
    %140 = vmatpush.msra.mxu0 %v123
    %141 = vmatpush.msra.mxu0 %v121
    %142 = vmatpush.msra.mxu0 %v119
    %143 = vmatpush.msra.mxu0 %v117
    %144 = vmatpush.msra.mxu0 %v115
    %145 = vmatpush.msra.mxu0 %v113
    %146 = vmatpush.msra.mxu0 %v111
    %147 = vmatpush.msra.mxu0 %v109
    %148 = vmatpush.msra.mxu0 %v107
    %149 = vmatpush.msra.mxu0 %v105
    %150 = vmatpush.msra.mxu0 %v103
    %151 = vmatpush.msra.mxu0 %v101
    %152 = vmatpush.msra.mxu0 %v99
    %153 = vmatmul.f32.gmra.mxu0 %v98
    %v154 = vpop.f32.mrf.mxu0
    %v155 = vadd.f32 %v133, %v154
    %156 = vdwg.mxu0
    %157 = vmatpush.msra.mxu0 %v130
    %158 = vmatpush.msra.mxu0 %v128
    %159 = vmatpush.msra.mxu0 %v126
    %160 = vmatpush.msra.mxu0 %v124
    %161 = vmatpush.msra.mxu0 %v122
    %162 = vmatpush.msra.mxu0 %v120
    %163 = vmatpush.msra.mxu0 %v118
    %164 = vmatpush.msra.mxu0 %v116
    %165 = vmatpush.msra.mxu0 %v114
    %166 = vmatpush.msra.mxu0 %v112
    %167 = vmatpush.msra.mxu0 %v110
    %168 = vmatpush.msra.mxu0 %v108
    %169 = vmatpush.msra.mxu0 %v106
    %170 = vmatpush.msra.mxu0 %v104
    %171 = vmatpush.msra.mxu0 %v102
    %172 = vmatpush.msra.mxu0 %v100
    %173 = vmatmul.f32.gmra.mxu0 %v98
    %v174 = vpop.f32.mrf.mxu0
    %v175 = vadd.f32 %v134, %v174
    %176 = vdwg.mxu0
    %v177 = vmax.f32 %v155, 0.0
    %v178 = vmax.f32 %v175, 0.0
    %v179 = vld [vmem:[#allocation5] sm:$0xff]
    %v180 = vld [vmem:[#allocation5 + $0x8] sm:$0xff]
    %v181 = vld [vmem:[#allocation5 + $0x10] sm:$0xff]
    %v182 = vld [vmem:[#allocation5 + $0x18] sm:$0xff]
    %v183 = vld [vmem:[#allocation5 + $0x20] sm:$0xff]
    %v184 = vld [vmem:[#allocation5 + $0x28] sm:$0xff]
    %v185 = vld [vmem:[#allocation5 + $0x30] sm:$0xff]
    %v186 = vld [vmem:[#allocation5 + $0x38] sm:$0xff]
    %v187 = vld [vmem:[#allocation5 + $0x40] sm:$0xff]
    %v188 = vld [vmem:[#allocation5 + $0x48] sm:$0xff]
    %v189 = vld [vmem:[#allocation5 + $0x50] sm:$0xff]
    %v190 = vld [vmem:[#allocation5 + $0x58] sm:$0xff]
    %v191 = vld [vmem:[#allocation5 + $0x60] sm:$0xff]
    %v192 = vld [vmem:[#allocation5 + $0x68] sm:$0xff]
    %v193 = vld [vmem:[#allocation5 + $0x70] sm:$0xff]
    %v194 = vld [vmem:[#allocation5 + $0x78] sm:$0xff]
    %v195 = vld [vmem:[#allocation5 + $0x80] sm:$0xff]
    %v196 = vld [vmem:[#allocation5 + $0x88] sm:$0xff]
    %v197 = vld [vmem:[#allocation5 + $0x90] sm:$0xff]
    %v198 = vld [vmem:[#allocation5 + $0x98] sm:$0xff]
    %v199 = vld [vmem:[#allocation5 + $0xa0] sm:$0xff]
    %v200 = vld [vmem:[#allocation5 + $0xa8] sm:$0xff]
    %v201 = vld [vmem:[#allocation5 + $0xb0] sm:$0xff]
    %v202 = vld [vmem:[#allocation5 + $0xb8] sm:$0xff]
    %v203 = vld [vmem:[#allocation5 + $0xc0] sm:$0xff]
    %v204 = vld [vmem:[#allocation5 + $0xc8] sm:$0xff]
    %v205 = vld [vmem:[#allocation5 + $0xd0] sm:$0xff]
    %v206 = vld [vmem:[#allocation5 + $0xd8] sm:$0xff]
    %v207 = vld [vmem:[#allocation5 + $0xe0] sm:$0xff]
    %v208 = vld [vmem:[#allocation5 + $0xe8] sm:$0xff]
    %v209 = vld [vmem:[#allocation5 + $0xf0] sm:$0xff]
    %v210 = vld [vmem:[#allocation5 + $0xf8] sm:$0xff]
    %v211 = vld [vmem:[%s6] sm:$0x1]
    %v213 = vperm.slane %v211, 0
    %215 = vmatpush.msra.mxu0 %v194
    %216 = vmatpush.msra.mxu0 %v193
    %217 = vmatpush.msra.mxu0 %v192
    %218 = vmatpush.msra.mxu0 %v191
    %219 = vmatpush.msra.mxu0 %v190
    %220 = vmatpush.msra.mxu0 %v189
    %221 = vmatpush.msra.mxu0 %v188
    %222 = vmatpush.msra.mxu0 %v187
    %223 = vmatpush.msra.mxu0 %v186
    %224 = vmatpush.msra.mxu0 %v185
    %225 = vmatpush.msra.mxu0 %v184
    %226 = vmatpush.msra.mxu0 %v183
    %227 = vmatpush.msra.mxu0 %v182
    %228 = vmatpush.msra.mxu0 %v181
    %229 = vmatpush.msra.mxu0 %v180
    %230 = vmatpush.msra.mxu0 %v179
    %231 = vmatmul.f32.gmra.mxu0 %v177
    %v232 = vpop.f32.mrf.mxu0
    %v233 = vadd.f32 %v213, %v232
    %234 = vdwg.mxu0
    %235 = vmatpush.msra.mxu0 %v210
    %236 = vmatpush.msra.mxu0 %v209
    %237 = vmatpush.msra.mxu0 %v208
    %238 = vmatpush.msra.mxu0 %v207
    %239 = vmatpush.msra.mxu0 %v206
    %240 = vmatpush.msra.mxu0 %v205
    %241 = vmatpush.msra.mxu0 %v204
    %242 = vmatpush.msra.mxu0 %v203
    %243 = vmatpush.msra.mxu0 %v202
    %244 = vmatpush.msra.mxu0 %v201
    %245 = vmatpush.msra.mxu0 %v200
    %246 = vmatpush.msra.mxu0 %v199
    %247 = vmatpush.msra.mxu0 %v198
    %248 = vmatpush.msra.mxu0 %v197
    %249 = vmatpush.msra.mxu0 %v196
    %250 = vmatpush.msra.mxu0 %v195
    %251 = vmatmul.f32.gmra.mxu0 %v178
    %v252 = vpop.f32.mrf.mxu0
    %v253 = vadd.f32 %v233, %v252
    %254 = vdwg.mxu0
    %v255 = vmax.f32 %v253, 0.0
    %v256 = vld [vmem:[%s7] sm:$0xff]
    %v257 = vld [vmem:[%s7 + $0x8] sm:$0xff]
    %v258 = vld [vmem:[%s7 + $0x10] sm:$0xff]
    %v259 = vld [vmem:[%s7 + $0x18] sm:$0xff]
    %v260 = vld [vmem:[%s7 + $0x20] sm:$0xff]
    %v261 = vld [vmem:[%s7 + $0x28] sm:$0xff]
    %v262 = vld [vmem:[%s7 + $0x30] sm:$0xff]
    %v263 = vld [vmem:[%s7 + $0x38] sm:$0xff]
    %v264 = vld [vmem:[%s7 + $0x40] sm:$0xff]
    %v265 = vld [vmem:[%s7 + $0x48] sm:$0xff]
    %v266 = vld [vmem:[%s7 + $0x50] sm:$0xff]
    %v267 = vld [vmem:[%s7 + $0x58] sm:$0xff]
    %v268 = vld [vmem:[%s7 + $0x60] sm:$0xff]
    %v269 = vld [vmem:[%s7 + $0x68] sm:$0xff]
    %v270 = vld [vmem:[%s7 + $0x70] sm:$0xff]
    %v271 = vld [vmem:[%s7 + $0x78] sm:$0xff]
    %v272 = vld [vmem:[%s8] sm:$0x1]
    %v274 = vperm.slane %v272, 0
    %276 = vmatpush.msra.mxu0 %v271
    %277 = vmatpush.msra.mxu0 %v270
    %278 = vmatpush.msra.mxu0 %v269
    %279 = vmatpush.msra.mxu0 %v268
    %280 = vmatpush.msra.mxu0 %v267
    %281 = vmatpush.msra.mxu0 %v266
    %282 = vmatpush.msra.mxu0 %v265
    %283 = vmatpush.msra.mxu0 %v264
    %284 = vmatpush.msra.mxu0 %v263
    %285 = vmatpush.msra.mxu0 %v262
    %286 = vmatpush.msra.mxu0 %v261
    %287 = vmatpush.msra.mxu0 %v260
    %288 = vmatpush.msra.mxu0 %v259
    %289 = vmatpush.msra.mxu0 %v258
    %290 = vmatpush.msra.mxu0 %v257
    %291 = vmatpush.msra.mxu0 %v256
    %292 = vmatmul.f32.gmra.mxu0 %v255
    %v293 = vpop.f32.mrf.mxu0
    %v294 = vadd.f32 %v274, %v293
    %295 = vdwg.mxu0
    %296 = vst.msk [vmem:[#allocation7] sm:$0xff] %vm74, %v294
    // Predicated region
    $region46: #{diffusion_model_forward.1} parent=1 // pred_check
      _
    $region47: #{diffusion_model_forward.1} parent=1 // pred_check_branch
      %298 = sbr.rel (0) target = $region49
    $region48: #{diffusion_model_forward.1} parent=1 // pred_region
      %300 = vsyncadd [#allocation4], 0
      %s302 = sshll.u32 [#allocation7], 4
      %s303 = int_to_ptr.vmem [resolvable:$true] %s302
      %s304 = sshll.u32 %s9, 4
      %s305 = int_to_ptr.hbm [resolvable:$true] %s304
      %307 = dma.vmem_to_hbm [thread:$0]  %s303, 128, %s305, [#allocation4]
    $region49: #{diffusion_model_forward.1} parent=1 // pred_fallthru
      _
    // Predicated region
    $region50: #{diffusion_model_forward.1} parent=1 // pred_check
      _
    $region51: #{diffusion_model_forward.1} parent=1 // pred_check_branch
      %309 = sbr.rel (0) target = $region53
    $region52: #{diffusion_model_forward.1} parent=1 // pred_region
      %311 = dma.done [#allocation4], 128
    $region53: #{diffusion_model_forward.1} parent=1 // pred_fallthru
      _
    %312 = vsyncpa [#allocation3], 1
    %313 = vsyncpa [#allocation6], 1
    %314 = vsyncpa [#allocation4], 1

</llo_original>
